<compile_context>
chip_gen: v7x
topology: tpu7x:2x2x1
jax: 0.10.0
libtpu: 0.0.40
codegen_flags: <defaults>
</compile_context>

<pallas_src>
import functools

import jax
import jax.numpy as jnp
from jax.experimental import pallas as pl
from jax.experimental.pallas import tpu as pltpu


def _round_up(x, m):
    return (x + m - 1) // m * m


def _pick_divisor_tile(total, cap):
    """Largest multiple of 128 that divides `total` (itself a multiple of 128)
    and is <= cap. Falls back to 128."""
    best = 128
    t = 128
    limit = min(total, cap)
    while t <= limit:
        if total % t == 0:
            best = t
        t += 128
    return best


# --------------------------------------------------------------------------
# Kernels
# --------------------------------------------------------------------------
def _conv_pooler_kernel_single(compute_dtype, x_ref, w_ref, b_ref, o_ref):
    """Single K step: out tile = X tile @ W tile + bias (no scratch, no when)."""
    xt = x_ref[...]
    if xt.dtype != compute_dtype:
        xt = xt.astype(compute_dtype)          # in-kernel cast (no wrapper copy)
    acc = jnp.dot(xt, w_ref[...], preferred_element_type=jnp.float32)
    o_ref[...] = (acc + b_ref[...]).astype(o_ref.dtype)


def _conv_pooler_kernel_multi(compute_dtype, x_ref, w_ref, b_ref, o_ref, acc_ref):
    """K-reduction over grid axis 2; accumulator initialized with the bias."""
    k = pl.program_id(2)

    @pl.when(k == 0)
    def _init():
        # bias folded into the accumulator init: saves a full VPU/store pass
        acc_ref[...] = jnp.broadcast_to(b_ref[...], acc_ref.shape)

    xt = x_ref[...]
    if xt.dtype != compute_dtype:
        xt = xt.astype(compute_dtype)
    acc_ref[...] += jnp.dot(xt, w_ref[...], preferred_element_type=jnp.float32)

    @pl.when(k == pl.num_programs(2) - 1)
    def _finalize():
        o_ref[...] = acc_ref[...].astype(o_ref.dtype)


# --------------------------------------------------------------------------
# One-time weight re-layout (hoist out of the per-call path)
# --------------------------------------------------------------------------
def prepare_conv_pooler_params(weight, bias, *, compute_dtype=jnp.float32):
    """weight: (ft_out, d_latents, num_latents) torch Conv1d layout; bias: (ft_out,).

    Returns (w_mat, b_row, meta):
      w_mat : (K_pad, F_pad) with w_mat[k*D + c, o] = weight[o, c, k]
      b_row : (1, F_pad) f32
    """
    F_out, D, N = weight.shape
    K = N * D
    bpe_w = jnp.dtype(compute_dtype).itemsize

    # F tile: collapse the F grid axis whenever it fits (any realistic ft_out).
    F_pad = _round_up(F_out, 128)
    tn = _pick_divisor_tile(F_pad, 2048)

    # K tile: pad K only to a 128 multiple; tk divides K_pad (no tile over-pad).
    K_pad = _round_up(K, 128)
    tk_cap_w = max(128, ((4 << 20) // max(tn * bpe_w, 1)) // 128 * 128)  # W tile <= 4 MiB
    tk = _pick_divisor_tile(K_pad, min(2048, tk_cap_w))

    # (o, c, k) -> (k, c, o) -> flatten (k, c): matches x.reshape(B, N*D) ordering.
    w_mat = jnp.transpose(weight, (2, 1, 0)).reshape(K, F_out)
    w_mat = jnp.pad(w_mat, ((0, K_pad - K), (0, F_pad - F_out))).astype(compute_dtype)

    b_row = jnp.pad(bias.astype(jnp.float32), (0, F_pad - F_out)).reshape(1, F_pad)

    meta = dict(N=N, D=D, K=K, F_out=F_out, K_pad=K_pad, F_pad=F_pad,
                tn=tn, tk=tk, compute_dtype=compute_dtype)
    return w_mat, b_row, meta


# --------------------------------------------------------------------------
# Forward
# --------------------------------------------------------------------------
def conv_pooler_apply(x, w_mat, b_row, meta):
    """x: (B, num_latents, d_latents) -> (B, ft_out)."""
    B, N, D = x.shape
    assert N == meta["N"] and D == meta["D"], "input shape mismatch vs prepared params"
    K, K_pad = meta["K"], meta["K_pad"]
    F_out, F_pad = meta["F_out"], meta["F_pad"]
    tn, tk = meta["tn"], meta["tk"]
    cdt = meta["compute_dtype"]
    out_dtype = x.dtype

    # No wrapper-side cast of X; no M padding (overhanging last block is fine,
    # garbage rows >= B are sliced off). K is zero-padded only if needed.
    x_flat = x.reshape(B, K)
    if K_pad > K:
        x_flat = jnp.pad(x_flat, ((0, 0), (0, K_pad - K)))

    # M tile picked from B (not B rounded up to a tile).
    if B <= 256:
        tm = B                      # block dim equals full array dim: always legal
    else:
        tm = 256                    # multiple of 8/16/32 sublane packing
    m_blocks = pl.cdiv(B, tm)
    j_blocks = F_pad // tn
    k_blocks = K_pad // tk

    # Per-step VMEM need (double-buffered tiles; bias counted sublane-padded).
    bpe_x = jnp.dtype(x.dtype).itemsize
    bpe_w = jnp.dtype(w_mat.dtype).itemsize
    bpe_o = jnp.dtype(out_dtype).itemsize
    est = (2 * (tm * tk * bpe_x + tk * tn * bpe_w + tm * tn * bpe_o)
           + tm * tn * 4            # f32 accumulator (multi-K path)
           + 2 * 8 * tn * 4)        # bias tile padded to (8, tn)
    vmem_limit = int(min(40 * 1024 * 1024, max(2 * est, 8 * 1024 * 1024)))

    if k_blocks == 1:
        # Specialized single-K kernel: no scratch, no pl.when, bias fused.
        kernel = functools.partial(_conv_pooler_kernel_single, cdt)
        grid = (m_blocks, j_blocks)
        in_specs = [
            pl.BlockSpec((tm, tk), lambda i, j: (i, 0)),   # X tile
            pl.BlockSpec((tk, tn), lambda i, j: (0, j)),   # W tile
            pl.BlockSpec((1, tn), lambda i, j: (0, j)),    # bias tile
        ]
        out_specs = pl.BlockSpec((tm, tn), lambda i, j: (i, j))
        scratch_shapes = []
        dim_sem = ("parallel", "parallel")
    else:
        kernel = functools.partial(_conv_pooler_kernel_multi, cdt)
        grid = (m_blocks, j_blocks, k_blocks)
        in_specs = [
            pl.BlockSpec((tm, tk), lambda i, j, k: (i, k)),
            pl.BlockSpec((tk, tn), lambda i, j, k: (k, j)),
            pl.BlockSpec((1, tn), lambda i, j, k: (0, j)),
        ]
        out_specs = pl.BlockSpec((tm, tn), lambda i, j, k: (i, j))
        scratch_shapes = [pltpu.VMEM((tm, tn), jnp.float32)]
        dim_sem = ("parallel", "parallel", "arbitrary")

    out_padded = pl.pallas_call(
        kernel,
        out_shape=jax.ShapeDtypeStruct((B, F_pad), out_dtype),
        grid_spec=pltpu.PrefetchScalarGridSpec(
            num_scalar_prefetch=0,
            grid=grid,
            in_specs=in_specs,
            out_specs=out_specs,
            scratch_shapes=scratch_shapes,
        ),
        compiler_params=pltpu.CompilerParams(
            dimension_semantics=dim_sem,
            vmem_limit_bytes=vmem_limit,
        ),
    )(x_flat, w_mat, b_row)

    return out_padded[:B, :F_out]


def conv_pooler(x, weight, bias, *, compute_dtype=None):
    """Convenience wrapper (re-lays-out weights per call; prefer hoisting)."""
    if compute_dtype is None:
        compute_dtype = x.dtype
    w_mat, b_row, meta = prepare_conv_pooler_params(weight, bias,
                                                    compute_dtype=compute_dtype)
    return conv_pooler_apply(x, w_mat, b_row, meta)


def conv_pooler_ref(x, weight, bias):
    # Pure-JAX reference: out[b,o] = sum_{k,c} x[b,k,c] * W[o,c,k] + bias[o]
    return jnp.einsum("bkc,ock->bo", x, weight) + bias[None, :]


if __name__ == "__main__":
    key = jax.random.PRNGKey(0)

    # --- Shipped toy config: d_latents=32, num_latents=8, ft_out=16, B=2 ----
    B, num_latents, d_latents, ft_out = 2, 8, 32, 16
    kx, kw, kb, key = jax.random.split(key, 4)
    x = jax.random.normal(kx, (B, num_latents, d_latents), dtype=jnp.float32)
    weight = jax.random.normal(kw, (ft_out, d_latents, num_latents),
                               dtype=jnp.float32) * 0.05
    bias = jax.random.normal(kb, (ft_out,), dtype=jnp.float32) * 0.05

    ref = conv_pooler_ref(x, weight, bias)

    # f32 path (single-K specialized kernel; weight relayout hoisted).
    w_mat, b_row, meta = prepare_conv_pooler_params(weight, bias,
                                                    compute_dtype=jnp.float32)
    out = jax.block_until_ready(conv_pooler_apply(x, w_mat, b_row, meta))
    assert out.shape == (B, ft_out)
    assert jnp.allclose(out, ref, atol=1e-4, rtol=1e-4), "f32 mismatch vs reference"

    # bf16 weights on the MXU (X cast per-tile in-kernel; f32 accumulation).
    # NOTE: lower precision than the PyTorch f32 Conv1d reference.
    w16, b16, meta16 = prepare_conv_pooler_params(weight, bias,
                                                  compute_dtype=jnp.bfloat16)
    out16 = jax.block_until_ready(conv_pooler_apply(x, w16, b16, meta16))
    assert out16.shape == (B, ft_out)
    assert jnp.allclose(out16.astype(jnp.float32), ref, atol=5e-2, rtol=5e-2), \
        "bf16 mismatch vs reference"

    # --- Second (still small) config exercising the multi-K accumulator path -
    B2, num_latents2, d_latents2, ft_out2 = 4, 64, 40, 16   # K=2560 -> tk=1280, 2 K steps
    kx2, kw2, kb2, _ = jax.random.split(key, 4)
    x2 = jax.random.normal(kx2, (B2, num_latents2, d_latents2), dtype=jnp.float32)
    weight2 = jax.random.normal(kw2, (ft_out2, d_latents2, num_latents2),
                                dtype=jnp.float32) * 0.05
    bias2 = jax.random.normal(kb2, (ft_out2,), dtype=jnp.float32) * 0.05

    ref2 = conv_pooler_ref(x2, weight2, bias2)
    w2, b2, meta2 = prepare_conv_pooler_params(weight2, bias2,
                                               compute_dtype=jnp.float32)
    out2 = jax.block_until_ready(conv_pooler_apply(x2, w2, b2, meta2))
    assert out2.shape == (B2, ft_out2)
    assert jnp.allclose(out2, ref2, atol=1e-3, rtol=1e-3), "multi-K mismatch vs reference"

    print("KERNEL_OK")
</pallas_src>

<mosaic_0001>
module attributes {stable_mosaic.version = 11 : i64} {
  func.func @_conv_pooler_kernel_single(%arg0: i32, %arg1: i32, %arg2: memref<2x256xf32, #tpu.memory_space<vmem>>, %arg3: memref<256x128xf32, #tpu.memory_space<vmem>>, %arg4: memref<1x128xf32, #tpu.memory_space<vmem>>, %arg5: memref<2x128xf32, #tpu.memory_space<vmem>>) attributes {dimension_semantics = [#tpu.dimension_semantics<parallel>, #tpu.dimension_semantics<parallel>], iteration_bounds = array<i64: 1, 1>, scalar_prefetch = 0 : i64, scratch_operands = 0 : i64, tpu.core_type = #tpu.core_type<tc>, window_params = [{transform_indices = @transform_0, window_bounds = array<i64: 2, 256>}, {transform_indices = @transform_1, window_bounds = array<i64: 256, 128>}, {transform_indices = @transform_2, window_bounds = array<i64: 1, 128>}, {transform_indices = @transform_3, window_bounds = array<i64: 2, 128>}]} {
    %c0 = arith.constant 0 : index
    %c0_0 = arith.constant 0 : index
    %0 = vector.load %arg2[%c0, %c0_0] : memref<2x256xf32, #tpu.memory_space<vmem>>, vector<2x256xf32>
    %c0_1 = arith.constant 0 : index
    %c0_2 = arith.constant 0 : index
    %1 = vector.load %arg3[%c0_1, %c0_2] : memref<256x128xf32, #tpu.memory_space<vmem>>, vector<256x128xf32>
    %cst = arith.constant dense<0.000000e+00> : vector<2x128xf32>
    %2 = tpu.matmul %0, %1, %cst {dimension_numbers = #tpu.dot_dimension_numbers<[1], [0], [0], [1], [0, 0, 1, 1], [], []>} : vector<2x256xf32>, vector<256x128xf32>, vector<2x128xf32> -> vector<2x128xf32>
    %c0_3 = arith.constant 0 : index
    %c0_4 = arith.constant 0 : index
    %3 = vector.load %arg4[%c0_3, %c0_4] : memref<1x128xf32, #tpu.memory_space<vmem>>, vector<1x128xf32>
    %4 = vector.broadcast %3 : vector<1x128xf32> to vector<2x128xf32>
    %5 = arith.addf %2, %4 : vector<2x128xf32>
    %c0_5 = arith.constant 0 : index
    %c0_6 = arith.constant 0 : index
    %6 = vector.load %arg5[%c0_5, %c0_6] : memref<2x128xf32, #tpu.memory_space<vmem>>, vector<2x128xf32>
    tpu.vector_store %arg5[%c0_5, %c0_6], %5 {strides = array<i32>} : memref<2x128xf32, #tpu.memory_space<vmem>>, vector<2x128xf32>,
    return
  }
  func.func @transform_0(%arg0: i32, %arg1: i32) -> (i32, i32) {
    %c0_i32 = arith.constant 0 : i32
    %c0_i32_0 = arith.constant 0 : i32
    return %arg0, %c0_i32 : i32, i32
  }
  func.func @transform_1(%arg0: i32, %arg1: i32) -> (i32, i32) {
    %c0_i32 = arith.constant 0 : i32
    %c0_i32_0 = arith.constant 0 : i32
    return %c0_i32, %arg1 : i32, i32
  }
  func.func @transform_2(%arg0: i32, %arg1: i32) -> (i32, i32) {
    %c0_i32 = arith.constant 0 : i32
    %c0_i32_0 = arith.constant 0 : i32
    return %c0_i32, %arg1 : i32, i32
  }
  func.func @transform_3(%arg0: i32, %arg1: i32) -> (i32, i32) {
    %c0_i32 = arith.constant 0 : i32
    return %arg0, %arg1 : i32, i32
  }
}

</mosaic_0001>

<llo_original>
// kernel: tpu_custom_call.1
$region0: #{tpu_custom_call.1}
  #allocation0 [shape = 'u32[]', space=smem, size = 0x4, offset = 0x4, fixed_abs, tag = 'smem constant byte address 0x4 - core index']
  #allocation1 [shape = 'u32[144,128]{1,0:T(1,128)}', space=vmem, size = 0x12000, scoped, tag = 'internal scratch']
  %s0 = inlined_call_operand.hbm [shape: f32[2,256], index: 0, kind: input, shape index: {}]
  %s1 = inlined_call_operand.hbm [shape: f32[256,128], index: 1, kind: input, shape index: {}]
  %s2 = inlined_call_operand.vmem [shape: f32[1,128], index: 2, kind: input, shape index: {}]
  %s3 = inlined_call_operand.hbm [shape: f32[2,128], index: 3, kind: output, shape index: {}]
  %s4 = sld [smem:[#allocation0]]
  $region30: #{tpu_custom_call.1} parent=0
    _
  %s6 = ssub.s32 1, %s4
  %s7 = scalar_select 0, %s6, %s4
  $region1: #{tpu_custom_call.1} parent=0
    #allocation2 [shape = 'u8[2048]{0}', space=vmem, size = 0x800, scoped, tag = 'input window, operand 0, single buffered']
    #allocation3 [shape = 's32[1]{0}', space=sflag, size = 0x4, scoped, tag = 'scoped memory for tpu_custom_call.1']
    #allocation4 [shape = 's32[1]{0}', space=sflag, size = 0x4, scoped, tag = 'scoped memory for tpu_custom_call.1']
    #allocation5 [shape = 'u8[131072]{0}', space=vmem, size = 0x20000, scoped, tag = 'input window, operand 1, single buffered']
    #allocation6 [shape = 's32[1]{0}', space=sflag, size = 0x4, scoped, tag = 'scoped memory for tpu_custom_call.1']
    #allocation7 [shape = 'u8[1024]{0}', space=vmem, size = 0x400, scoped, tag = 'output window, operand 0, single buffered']
    %8 = vsyncpa [#allocation3], 0
    %9 = vsyncpa [#allocation6], 0
    %10 = vsyncpa [#allocation4], 0
    // Predicated region
    $region2: #{tpu_custom_call.1} parent=1 // pred_check
      _
    $region3: #{tpu_custom_call.1} parent=1 // pred_check_branch
      %12 = sbr.rel (0) target = $region5
    $region4: #{tpu_custom_call.1} parent=1 // pred_region
      %s14 = ssub.s32 64, 64
      %15 = vsyncadd [#allocation3], %s14
      %s17 = sshll.u32 [#allocation2], 4
      %s18 = int_to_ptr.vmem [resolvable:$true] %s17
      %20 = dma.hbm_to_vmem [thread:$0]  %s0, 64, %s18, [#allocation3]
    $region5: #{tpu_custom_call.1} parent=1 // pred_fallthru
      _
    // Predicated region
    $region6: #{tpu_custom_call.1} parent=1 // pred_check
      _
    $region7: #{tpu_custom_call.1} parent=1 // pred_check_branch
      %22 = sbr.rel (0) target = $region9
    $region8: #{tpu_custom_call.1} parent=1 // pred_region
      %s24 = ssub.s32 4096, 4096
      %25 = vsyncadd [#allocation6], %s24
      %s26 = sshll.u32 [#allocation5], 4
      %s27 = int_to_ptr.vmem [resolvable:$true] %s26
      %32 = dma.hbm_to_vmem [thread:$0]  %s1, 4096, %s27, [#allocation6], 128, 128, 8
    $region9: #{tpu_custom_call.1} parent=1 // pred_fallthru
      _
    // Predicated region
    $region10: #{tpu_custom_call.1} parent=1 // pred_check
      _
    $region11: #{tpu_custom_call.1} parent=1 // pred_check_branch
      %34 = sbr.rel (0) target = $region13
    $region12: #{tpu_custom_call.1} parent=1 // pred_region
      _
    $region13: #{tpu_custom_call.1} parent=1 // pred_fallthru
      _
    // Predicated region
    $region14: #{tpu_custom_call.1} parent=1 // pred_check
      _
    $region15: #{tpu_custom_call.1} parent=1 // pred_check_branch
      %36 = sbr.rel (0) target = $region17
    $region16: #{tpu_custom_call.1} parent=1 // pred_region
      %37 = dma.done [#allocation3], 64
    $region17: #{tpu_custom_call.1} parent=1 // pred_fallthru
      _
    // Predicated region
    $region18: #{tpu_custom_call.1} parent=1 // pred_check
      _
    $region19: #{tpu_custom_call.1} parent=1 // pred_check_branch
      %39 = sbr.rel (0) target = $region21
    $region20: #{tpu_custom_call.1} parent=1 // pred_region
      %40 = dma.done [#allocation6], 4096
    $region21: #{tpu_custom_call.1} parent=1 // pred_fallthru
      _
    %v41 = vld [vmem:[#allocation2] sm:$0xf]
    %v42 = vld [vmem:[#allocation5] sm:$0xff]
    %v43 = vld [vmem:[#allocation5 + $0x8] sm:$0xff]
    %v44 = vld [vmem:[#allocation5 + $0x10] sm:$0xff]
    %v45 = vld [vmem:[#allocation5 + $0x18] sm:$0xff]
    %v46 = vld [vmem:[#allocation5 + $0x20] sm:$0xff]
    %v47 = vld [vmem:[#allocation5 + $0x28] sm:$0xff]
    %v48 = vld [vmem:[#allocation5 + $0x30] sm:$0xff]
    %v49 = vld [vmem:[#allocation5 + $0x38] sm:$0xff]
    %v50 = vld [vmem:[#allocation5 + $0x40] sm:$0xff]
    %v51 = vld [vmem:[#allocation5 + $0x48] sm:$0xff]
    %v52 = vld [vmem:[#allocation5 + $0x50] sm:$0xff]
    %v53 = vld [vmem:[#allocation5 + $0x58] sm:$0xff]
    %v54 = vld [vmem:[#allocation5 + $0x60] sm:$0xff]
    %v55 = vld [vmem:[#allocation5 + $0x68] sm:$0xff]
    %v56 = vld [vmem:[#allocation5 + $0x70] sm:$0xff]
    %v57 = vld [vmem:[#allocation5 + $0x78] sm:$0xff]
    %v58 = vld [vmem:[#allocation5 + $0x80] sm:$0xff]
    %v59 = vld [vmem:[#allocation5 + $0x88] sm:$0xff]
    %v60 = vld [vmem:[#allocation5 + $0x90] sm:$0xff]
    %v61 = vld [vmem:[#allocation5 + $0x98] sm:$0xff]
    %v62 = vld [vmem:[#allocation5 + $0xa0] sm:$0xff]
    %v63 = vld [vmem:[#allocation5 + $0xa8] sm:$0xff]
    %v64 = vld [vmem:[#allocation5 + $0xb0] sm:$0xff]
    %v65 = vld [vmem:[#allocation5 + $0xb8] sm:$0xff]
    %v66 = vld [vmem:[#allocation5 + $0xc0] sm:$0xff]
    %v67 = vld [vmem:[#allocation5 + $0xc8] sm:$0xff]
    %v68 = vld [vmem:[#allocation5 + $0xd0] sm:$0xff]
    %v69 = vld [vmem:[#allocation5 + $0xd8] sm:$0xff]
    %v70 = vld [vmem:[#allocation5 + $0xe0] sm:$0xff]
    %v71 = vld [vmem:[#allocation5 + $0xe8] sm:$0xff]
    %v72 = vld [vmem:[#allocation5 + $0xf0] sm:$0xff]
    %v73 = vld [vmem:[#allocation5 + $0xf8] sm:$0xff]
    %v74 = vld [vmem:[%s2] sm:$0x1]
    %v76 = vlaneseq
    %v77 = vshrl.u32 %v76, 7
    %v78 = vsub.s32 0, %v77
    %v79 = vrot.slane %v74, %v78
    %v83 = vunpack.c.l.s4 1983009808
    %v84 = vunpack.c.0.s8 %v83
    %v85 = vlaneseq
    %v86 = vshrl.u32 %v85, 7
    %v87 = vsub.s32 %v84, %v86
    %v88 = vrot.slane %v41, %v87
    %v89 = vcombine.high %v88, %v88
    %92 = vmatprep.subr.mxu0 0.0
    %93 = vmatpush1.msra.mxu0 %v42
    %94 = vmatprep.subr.mxu0 0.0
    %95 = vmatpush1.msra.mxu0 %v43
    %96 = vmatprep.subr.mxu0 0.0
    %97 = vmatpush1.msra.mxu0 %v44
    %98 = vmatprep.subr.mxu0 0.0
    %99 = vmatpush1.msra.mxu0 %v45
    %100 = vmatprep.subr.mxu0 0.0
    %101 = vmatpush1.msra.mxu0 %v46
    %102 = vmatprep.subr.mxu0 0.0
    %103 = vmatpush1.msra.mxu0 %v47
    %104 = vmatprep.subr.mxu0 0.0
    %105 = vmatpush1.msra.mxu0 %v48
    %106 = vmatprep.subr.mxu0 0.0
    %107 = vmatpush1.msra.mxu0 %v49
    %108 = vmatprep.subr.mxu0 0.0
    %109 = vmatpush1.msra.mxu0 %v50
    %110 = vmatprep.subr.mxu0 0.0
    %111 = vmatpush1.msra.mxu0 %v51
    %112 = vmatprep.subr.mxu0 0.0
    %113 = vmatpush1.msra.mxu0 %v52
    %114 = vmatprep.subr.mxu0 0.0
    %115 = vmatpush1.msra.mxu0 %v53
    %116 = vmatprep.subr.mxu0 0.0
    %117 = vmatpush1.msra.mxu0 %v54
    %118 = vmatprep.subr.mxu0 0.0
    %119 = vmatpush1.msra.mxu0 %v55
    %120 = vmatprep.subr.mxu0 0.0
    %121 = vmatpush1.msra.mxu0 %v56
    %122 = vmatprep.subr.mxu0 0.0
    %123 = vmatpush1.msra.mxu0 %v57
    %124 = vmatprep.subr.mxu0 0.0
    %125 = vmatpush1.msra.mxu0 %v58
    %126 = vmatprep.subr.mxu0 0.0
    %127 = vmatpush1.msra.mxu0 %v59
    %128 = vmatprep.subr.mxu0 0.0
    %129 = vmatpush1.msra.mxu0 %v60
    %130 = vmatprep.subr.mxu0 0.0
    %131 = vmatpush1.msra.mxu0 %v61
    %132 = vmatprep.subr.mxu0 0.0
    %133 = vmatpush1.msra.mxu0 %v62
    %134 = vmatprep.subr.mxu0 0.0
    %135 = vmatpush1.msra.mxu0 %v63
    %136 = vmatprep.subr.mxu0 0.0
    %137 = vmatpush1.msra.mxu0 %v64
    %138 = vmatprep.subr.mxu0 0.0
    %139 = vmatpush1.msra.mxu0 %v65
    %140 = vmatprep.subr.mxu0 0.0
    %141 = vmatpush1.msra.mxu0 %v66
    %142 = vmatprep.subr.mxu0 0.0
    %143 = vmatpush1.msra.mxu0 %v67
    %144 = vmatprep.subr.mxu0 0.0
    %145 = vmatpush1.msra.mxu0 %v68
    %146 = vmatprep.subr.mxu0 0.0
    %147 = vmatpush1.msra.mxu0 %v69
    %148 = vmatprep.subr.mxu0 0.0
    %149 = vmatpush1.msra.mxu0 %v70
    %150 = vmatprep.subr.mxu0 0.0
    %151 = vmatpush1.msra.mxu0 %v71
    %152 = vmatprep.subr.mxu0 0.0
    %153 = vmatpush1.msra.mxu0 %v72
    %154 = vmatprep.subr.mxu0 0.0
    %155 = vmatpush1.msra.mxu0 %v73
    %156 = vmatprep.mubr.f32.mxu0 %v89
    %157 = vmatmul.mubr.f32.gmra.mrb[0].mxu0 %v88
    %v158 = vpop.f32.mrb[0].mxu0
    %v159 = vadd.f32 %v79, %v158
    %v160 = vpop.f32.mrb[0].mxu0
    %161 = vdwg.mxu0
    %162 = vst [vmem:[#allocation7] sm:$0x3] %v159
    // Predicated region
    $region22: #{tpu_custom_call.1} parent=1 // pred_check
      _
    $region23: #{tpu_custom_call.1} parent=1 // pred_check_branch
      %164 = sbr.rel (0) target = $region25
    $region24: #{tpu_custom_call.1} parent=1 // pred_region
      %s166 = ssub.s32 32, 32
      %167 = vsyncadd [#allocation4], %s166
      %s169 = sshll.u32 [#allocation7], 4
      %s170 = int_to_ptr.vmem [resolvable:$true] %s169
      %172 = dma.vmem_to_hbm [thread:$0]  %s170, 32, %s3, [#allocation4]
    $region25: #{tpu_custom_call.1} parent=1 // pred_fallthru
      _
    // Predicated region
    $region26: #{tpu_custom_call.1} parent=1 // pred_check
      _
    $region27: #{tpu_custom_call.1} parent=1 // pred_check_branch
      %174 = sbr.rel (0) target = $region29
    $region28: #{tpu_custom_call.1} parent=1 // pred_region
      %175 = dma.done [#allocation4], 32
    $region29: #{tpu_custom_call.1} parent=1 // pred_fallthru
      _
    %176 = vsyncpa [#allocation3], 1
    %177 = vsyncpa [#allocation6], 1
    %178 = vsyncpa [#allocation4], 1

</llo_original>
